<compile_context>
chip_gen: v7x
topology: tpu7x:2x2x1
jax: 0.10.0
libtpu: 0.0.40
codegen_flags: <defaults>
</compile_context>

<pallas_src>
import jax
import jax.numpy as jnp
import numpy as np
from jax import lax
from jax.experimental import pallas as pl
from jax.experimental.pallas import tpu as pltpu


def a2c_lstm_kernel(inv_beta_ref, x_ref, w_ih_ref, w_hh_ref, b_ih_ref, b_hh_ref,
                    w_a_ref, b_a_ref, w_c_ref, b_c_ref,
                    pi_ref, v_ref, hid_scratch):
    T = x_ref.shape[0]
    H = w_hh_ref.shape[0]

    # ---- hoisted input projection: one matmul for all timesteps ----
    # gates_x[t] = x[t] @ W_ih + b_ih + b_hh, shape (T, 4H)
    gates_x = (jnp.dot(x_ref[...], w_ih_ref[...],
                       preferred_element_type=jnp.float32)
               + (b_ih_ref[...] + b_hh_ref[...]))

    w_hh = w_hh_ref[...]                                  # hoist weight load

    # ---- LSTM recurrence (h0 = c0 = 0), PyTorch gate order i, f, g, o ----
    # Fully unrolled: T is a static Python int, all slice offsets are constants.
    h = jnp.zeros((1, H), jnp.float32)
    c = jnp.zeros((1, H), jnp.float32)
    for t in range(T):
        gates = gates_x[t:t + 1, :] + jnp.dot(
            h, w_hh, preferred_element_type=jnp.float32)  # (1, 4H)
        # two full-vreg EUP ops instead of four masked sub-vreg ones
        sig_all = jax.nn.sigmoid(gates)                   # (1, 4H)
        tanh_all = jnp.tanh(gates)                        # (1, 4H)
        i_g = sig_all[:, 0:H]
        f_g = sig_all[:, H:2 * H]
        g_g = tanh_all[:, 2 * H:3 * H]
        o_g = sig_all[:, 3 * H:4 * H]
        c = f_g * c + i_g * g_g
        h = o_g * jnp.tanh(c)
        hid_scratch[pl.ds(t, 1), :] = h                   # static offset store

    # ---- actor head + softmax(z * (1/beta)) over torch.squeeze()'s dim 0 ----
    hidden = hid_scratch[...]                             # (T, H)
    logits = jnp.dot(hidden, w_a_ref[...],
                     preferred_element_type=jnp.float32) + b_a_ref[...]   # (T, A)
    z = logits * inv_beta_ref[0]
    # torch.squeeze: for T == 1 the time axis is squeezed away, so dim=0 of the
    # squeezed tensor is the action axis; for T > 1 it stays the time axis.
    sm_axis = 1 if T == 1 else 0
    z_max = jnp.max(z, axis=sm_axis, keepdims=True)
    e = jnp.exp(z - z_max)
    pi_ref[...] = e / jnp.sum(e, axis=sm_axis, keepdims=True)

    # ---- critic head: lane-width-1 output -> VPU multiply + lane reduce ----
    v_ref[...] = (jnp.sum(x_ref[...] * w_c_ref[...], axis=1, keepdims=True)
                  + b_c_ref[...])


def a2c_lstm_forward(x, params, beta=1.0):
    assert beta > 0
    T, D_in = x.shape
    H = params["w_hh"].shape[0]
    A = params["w_a"].shape[1]
    inv_beta = jnp.asarray([1.0 / float(beta)], dtype=jnp.float32)
    w_c_row = params["w_c"].reshape(1, D_in)              # (D_in,1) -> (1,D_in)

    pi, v = pl.pallas_call(
        a2c_lstm_kernel,
        out_shape=(jax.ShapeDtypeStruct((T, A), jnp.float32),
                   jax.ShapeDtypeStruct((T, 1), jnp.float32)),
        in_specs=[pl.BlockSpec(memory_space=pltpu.MemorySpace.SMEM)]      # 1/beta
                 + [pl.BlockSpec(memory_space=pltpu.MemorySpace.VMEM)] * 9,
        out_specs=(pl.BlockSpec(memory_space=pltpu.MemorySpace.VMEM),
                   pl.BlockSpec(memory_space=pltpu.MemorySpace.VMEM)),
        scratch_shapes=[pltpu.VMEM((T, H), jnp.float32)],
    )(inv_beta, x,
      params["w_ih"], params["w_hh"], params["b_ih"], params["b_hh"],
      params["w_a"], params["b_a"], w_c_row, params["b_c"])

    if T == 1:
        pi = pi.reshape(A)   # matches torch.squeeze for a single-step sequence
    return pi, v


def init_params(key, dim_input, dim_hidden, dim_output):
    """Deterministic init mirroring PyTorch default bounds (uniform +/- 1/sqrt(fan))."""
    ks = jax.random.split(key, 8)

    def u(k, shape, bound):
        return jax.random.uniform(k, shape, jnp.float32, -bound, bound)

    b_lstm = 1.0 / np.sqrt(dim_hidden)
    b_lin = 1.0 / np.sqrt(dim_hidden)
    b_crit = 1.0 / np.sqrt(dim_input)
    return dict(
        w_ih=u(ks[0], (dim_input, 4 * dim_hidden), b_lstm),   # transposed vs torch
        w_hh=u(ks[1], (dim_hidden, 4 * dim_hidden), b_lstm),
        b_ih=u(ks[2], (1, 4 * dim_hidden), b_lstm),
        b_hh=u(ks[3], (1, 4 * dim_hidden), b_lstm),
        w_a=u(ks[4], (dim_hidden, dim_output), b_lin),
        b_a=u(ks[5], (1, dim_output), b_lin),
        w_c=u(ks[6], (dim_input, 1), b_crit),
        b_c=u(ks[7], (1, 1), b_crit),
    )


def ref_forward(x, p, beta=1.0):
    """Pure-JAX reference of the PyTorch forward, for validation."""
    H = p["w_hh"].shape[0]

    def step(carry, x_t):
        h, c = carry
        gates = x_t @ p["w_ih"] + h @ p["w_hh"] + p["b_ih"][0] + p["b_hh"][0]
        i_g, f_g, g_g, o_g = jnp.split(gates, 4)
        c = jax.nn.sigmoid(f_g) * c + jax.nn.sigmoid(i_g) * jnp.tanh(g_g)
        h = jax.nn.sigmoid(o_g) * jnp.tanh(c)
        return (h, c), h

    (_, _), hs = lax.scan(step, (jnp.zeros(H), jnp.zeros(H)), x)
    logits = hs @ p["w_a"] + p["b_a"][0]
    z = jnp.squeeze(logits / beta)
    pi = jax.nn.softmax(z, axis=0)
    v = x @ p["w_c"] + p["b_c"][0]
    return pi, v


if __name__ == "__main__":
    # small shapes: seq T=8, dim_input=16, dim_hidden=32, dim_output=4
    T, D_IN, D_HID, D_OUT = 8, 16, 32, 4
    key = jax.random.PRNGKey(0)
    k_x, k_p = jax.random.split(key)
    x = jax.random.normal(k_x, (T, D_IN), dtype=jnp.float32)
    params = init_params(k_p, D_IN, D_HID, D_OUT)

    pi, v = a2c_lstm_forward(x, params, beta=1.0)
    jax.block_until_ready((pi, v))

    pi_ref, v_ref = ref_forward(x, params, beta=1.0)
    np.testing.assert_allclose(np.asarray(pi), np.asarray(pi_ref), atol=1e-3, rtol=1e-3)
    np.testing.assert_allclose(np.asarray(v), np.asarray(v_ref), atol=1e-3, rtol=1e-3)
    # softmax columns along torch.squeeze()'s dim 0 must each sum to 1
    np.testing.assert_allclose(np.asarray(pi.sum(axis=0)), np.ones(D_OUT), atol=1e-5)

    print("KERNEL_OK")
</pallas_src>

<mosaic_0001>
module attributes {stable_mosaic.version = 11 : i64} {
  func.func @a2c_lstm_kernel(%arg0: memref<1xf32, #tpu.memory_space<smem>>, %arg1: memref<8x16xf32, #tpu.memory_space<vmem>>, %arg2: memref<16x128xf32, #tpu.memory_space<vmem>>, %arg3: memref<32x128xf32, #tpu.memory_space<vmem>>, %arg4: memref<1x128xf32, #tpu.memory_space<vmem>>, %arg5: memref<1x128xf32, #tpu.memory_space<vmem>>, %arg6: memref<32x4xf32, #tpu.memory_space<vmem>>, %arg7: memref<1x4xf32, #tpu.memory_space<vmem>>, %arg8: memref<1x16xf32, #tpu.memory_space<vmem>>, %arg9: memref<1x1xf32, #tpu.memory_space<vmem>>, %arg10: memref<8x4xf32, #tpu.memory_space<vmem>>, %arg11: memref<8x1xf32, #tpu.memory_space<vmem>>, %arg12: memref<8x32xf32, #tpu.memory_space<vmem>>) attributes {dimension_semantics = [], scalar_prefetch = 0 : i64, scratch_operands = 1 : i64, tpu.core_type = #tpu.core_type<tc>} {
    %c0 = arith.constant 0 : index
    %c0_0 = arith.constant 0 : index
    %0 = vector.load %arg1[%c0, %c0_0] : memref<8x16xf32, #tpu.memory_space<vmem>>, vector<8x16xf32>
    %c0_1 = arith.constant 0 : index
    %c0_2 = arith.constant 0 : index
    %1 = vector.load %arg2[%c0_1, %c0_2] : memref<16x128xf32, #tpu.memory_space<vmem>>, vector<16x128xf32>
    %cst = arith.constant dense<0.000000e+00> : vector<8x128xf32>
    %2 = tpu.matmul %0, %1, %cst {dimension_numbers = #tpu.dot_dimension_numbers<[1], [0], [0], [1], [0, 0, 1, 1], [], []>} : vector<8x16xf32>, vector<16x128xf32>, vector<8x128xf32> -> vector<8x128xf32>
    %c0_3 = arith.constant 0 : index
    %c0_4 = arith.constant 0 : index
    %3 = vector.load %arg4[%c0_3, %c0_4] : memref<1x128xf32, #tpu.memory_space<vmem>>, vector<1x128xf32>
    %c0_5 = arith.constant 0 : index
    %c0_6 = arith.constant 0 : index
    %4 = vector.load %arg5[%c0_5, %c0_6] : memref<1x128xf32, #tpu.memory_space<vmem>>, vector<1x128xf32>
    %5 = arith.addf %3, %4 : vector<1x128xf32>
    %6 = vector.broadcast %5 : vector<1x128xf32> to vector<8x128xf32>
    %7 = arith.addf %2, %6 : vector<8x128xf32>
    %c0_7 = arith.constant 0 : index
    %c0_8 = arith.constant 0 : index
    %8 = vector.load %arg3[%c0_7, %c0_8] : memref<32x128xf32, #tpu.memory_space<vmem>>, vector<32x128xf32>
    %cst_9 = arith.constant 0.000000e+00 : f32
    %9 = vector.broadcast %cst_9 : f32 to vector<1x32xf32>
    %cst_10 = arith.constant 0.000000e+00 : f32
    %10 = vector.broadcast %cst_10 : f32 to vector<1x32xf32>
    %11 = vector.extract_strided_slice %7 {offsets = [0, 0], sizes = [1, 128], strides = [1, 1]} : vector<8x128xf32> to vector<1x128xf32>
    %cst_11 = arith.constant dense<0.000000e+00> : vector<1x128xf32>
    %12 = tpu.matmul %9, %8, %cst_11 {dimension_numbers = #tpu.dot_dimension_numbers<[1], [0], [0], [1], [0, 0, 1, 1], [], []>} : vector<1x32xf32>, vector<32x128xf32>, vector<1x128xf32> -> vector<1x128xf32>
    %13 = arith.addf %11, %12 : vector<1x128xf32>
    %14 = arith.negf %13 : vector<1x128xf32>
    %15 = math.exp %14 : vector<1x128xf32>
    %cst_12 = arith.constant 1.000000e+00 : f32
    %16 = vector.broadcast %cst_12 : f32 to vector<1x128xf32>
    %17 = arith.addf %16, %15 : vector<1x128xf32>
    %18 = arith.divf %16, %17 : vector<1x128xf32>
    %19 = math.tanh %13 : vector<1x128xf32>
    %20 = vector.extract_strided_slice %18 {offsets = [0, 0], sizes = [1, 32], strides = [1, 1]} : vector<1x128xf32> to vector<1x32xf32>
    %21 = vector.extract_strided_slice %18 {offsets = [0, 32], sizes = [1, 32], strides = [1, 1]} : vector<1x128xf32> to vector<1x32xf32>
    %22 = vector.extract_strided_slice %19 {offsets = [0, 64], sizes = [1, 32], strides = [1, 1]} : vector<1x128xf32> to vector<1x32xf32>
    %23 = vector.extract_strided_slice %18 {offsets = [0, 96], sizes = [1, 32], strides = [1, 1]} : vector<1x128xf32> to vector<1x32xf32>
    %24 = arith.mulf %21, %10 : vector<1x32xf32>
    %25 = arith.mulf %20, %22 : vector<1x32xf32>
    %26 = arith.addf %24, %25 : vector<1x32xf32>
    %27 = math.tanh %26 : vector<1x32xf32>
    %28 = arith.mulf %23, %27 : vector<1x32xf32>
    %c0_13 = arith.constant 0 : index
    %c0_14 = arith.constant 0 : index
    %29 = vector.load %arg12[%c0_13, %c0_14] : memref<8x32xf32, #tpu.memory_space<vmem>>, vector<1x32xf32>
    tpu.vector_store %arg12[%c0_13, %c0_14], %28 {strides = array<i32>} : memref<8x32xf32, #tpu.memory_space<vmem>>, vector<1x32xf32>,
    %30 = vector.extract_strided_slice %7 {offsets = [1, 0], sizes = [1, 128], strides = [1, 1]} : vector<8x128xf32> to vector<1x128xf32>
    %cst_15 = arith.constant dense<0.000000e+00> : vector<1x128xf32>
    %31 = tpu.matmul %28, %8, %cst_15 {dimension_numbers = #tpu.dot_dimension_numbers<[1], [0], [0], [1], [0, 0, 1, 1], [], []>} : vector<1x32xf32>, vector<32x128xf32>, vector<1x128xf32> -> vector<1x128xf32>
    %32 = arith.addf %30, %31 : vector<1x128xf32>
    %33 = arith.negf %32 : vector<1x128xf32>
    %34 = math.exp %33 : vector<1x128xf32>
    %cst_16 = arith.constant 1.000000e+00 : f32
    %35 = vector.broadcast %cst_16 : f32 to vector<1x128xf32>
    %36 = arith.addf %35, %34 : vector<1x128xf32>
    %37 = arith.divf %35, %36 : vector<1x128xf32>
    %38 = math.tanh %32 : vector<1x128xf32>
    %39 = vector.extract_strided_slice %37 {offsets = [0, 0], sizes = [1, 32], strides = [1, 1]} : vector<1x128xf32> to vector<1x32xf32>
    %40 = vector.extract_strided_slice %37 {offsets = [0, 32], sizes = [1, 32], strides = [1, 1]} : vector<1x128xf32> to vector<1x32xf32>
    %41 = vector.extract_strided_slice %38 {offsets = [0, 64], sizes = [1, 32], strides = [1, 1]} : vector<1x128xf32> to vector<1x32xf32>
    %42 = vector.extract_strided_slice %37 {offsets = [0, 96], sizes = [1, 32], strides = [1, 1]} : vector<1x128xf32> to vector<1x32xf32>
    %43 = arith.mulf %40, %26 : vector<1x32xf32>
    %44 = arith.mulf %39, %41 : vector<1x32xf32>
    %45 = arith.addf %43, %44 : vector<1x32xf32>
    %46 = math.tanh %45 : vector<1x32xf32>
    %47 = arith.mulf %42, %46 : vector<1x32xf32>
    %c1 = arith.constant 1 : index
    %c0_17 = arith.constant 0 : index
    %48 = vector.load %arg12[%c1, %c0_17] : memref<8x32xf32, #tpu.memory_space<vmem>>, vector<1x32xf32>
    tpu.vector_store %arg12[%c1, %c0_17], %47 {strides = array<i32>} : memref<8x32xf32, #tpu.memory_space<vmem>>, vector<1x32xf32>,
    %49 = vector.extract_strided_slice %7 {offsets = [2, 0], sizes = [1, 128], strides = [1, 1]} : vector<8x128xf32> to vector<1x128xf32>
    %cst_18 = arith.constant dense<0.000000e+00> : vector<1x128xf32>
    %50 = tpu.matmul %47, %8, %cst_18 {dimension_numbers = #tpu.dot_dimension_numbers<[1], [0], [0], [1], [0, 0, 1, 1], [], []>} : vector<1x32xf32>, vector<32x128xf32>, vector<1x128xf32> -> vector<1x128xf32>
    %51 = arith.addf %49, %50 : vector<1x128xf32>
    %52 = arith.negf %51 : vector<1x128xf32>
    %53 = math.exp %52 : vector<1x128xf32>
    %cst_19 = arith.constant 1.000000e+00 : f32
    %54 = vector.broadcast %cst_19 : f32 to vector<1x128xf32>
    %55 = arith.addf %54, %53 : vector<1x128xf32>
    %56 = arith.divf %54, %55 : vector<1x128xf32>
    %57 = math.tanh %51 : vector<1x128xf32>
    %58 = vector.extract_strided_slice %56 {offsets = [0, 0], sizes = [1, 32], strides = [1, 1]} : vector<1x128xf32> to vector<1x32xf32>
    %59 = vector.extract_strided_slice %56 {offsets = [0, 32], sizes = [1, 32], strides = [1, 1]} : vector<1x128xf32> to vector<1x32xf32>
    %60 = vector.extract_strided_slice %57 {offsets = [0, 64], sizes = [1, 32], strides = [1, 1]} : vector<1x128xf32> to vector<1x32xf32>
    %61 = vector.extract_strided_slice %56 {offsets = [0, 96], sizes = [1, 32], strides = [1, 1]} : vector<1x128xf32> to vector<1x32xf32>
    %62 = arith.mulf %59, %45 : vector<1x32xf32>
    %63 = arith.mulf %58, %60 : vector<1x32xf32>
    %64 = arith.addf %62, %63 : vector<1x32xf32>
    %65 = math.tanh %64 : vector<1x32xf32>
    %66 = arith.mulf %61, %65 : vector<1x32xf32>
    %c2 = arith.constant 2 : index
    %c0_20 = arith.constant 0 : index
    %67 = vector.load %arg12[%c2, %c0_20] : memref<8x32xf32, #tpu.memory_space<vmem>>, vector<1x32xf32>
    tpu.vector_store %arg12[%c2, %c0_20], %66 {strides = array<i32>} : memref<8x32xf32, #tpu.memory_space<vmem>>, vector<1x32xf32>,
    %68 = vector.extract_strided_slice %7 {offsets = [3, 0], sizes = [1, 128], strides = [1, 1]} : vector<8x128xf32> to vector<1x128xf32>
    %cst_21 = arith.constant dense<0.000000e+00> : vector<1x128xf32>
    %69 = tpu.matmul %66, %8, %cst_21 {dimension_numbers = #tpu.dot_dimension_numbers<[1], [0], [0], [1], [0, 0, 1, 1], [], []>} : vector<1x32xf32>, vector<32x128xf32>, vector<1x128xf32> -> vector<1x128xf32>
    %70 = arith.addf %68, %69 : vector<1x128xf32>
    %71 = arith.negf %70 : vector<1x128xf32>
    %72 = math.exp %71 : vector<1x128xf32>
    %cst_22 = arith.constant 1.000000e+00 : f32
    %73 = vector.broadcast %cst_22 : f32 to vector<1x128xf32>
    %74 = arith.addf %73, %72 : vector<1x128xf32>
    %75 = arith.divf %73, %74 : vector<1x128xf32>
    %76 = math.tanh %70 : vector<1x128xf32>
    %77 = vector.extract_strided_slice %75 {offsets = [0, 0], sizes = [1, 32], strides = [1, 1]} : vector<1x128xf32> to vector<1x32xf32>
    %78 = vector.extract_strided_slice %75 {offsets = [0, 32], sizes = [1, 32], strides = [1, 1]} : vector<1x128xf32> to vector<1x32xf32>
    %79 = vector.extract_strided_slice %76 {offsets = [0, 64], sizes = [1, 32], strides = [1, 1]} : vector<1x128xf32> to vector<1x32xf32>
    %80 = vector.extract_strided_slice %75 {offsets = [0, 96], sizes = [1, 32], strides = [1, 1]} : vector<1x128xf32> to vector<1x32xf32>
    %81 = arith.mulf %78, %64 : vector<1x32xf32>
    %82 = arith.mulf %77, %79 : vector<1x32xf32>
    %83 = arith.addf %81, %82 : vector<1x32xf32>
    %84 = math.tanh %83 : vector<1x32xf32>
    %85 = arith.mulf %80, %84 : vector<1x32xf32>
    %c3 = arith.constant 3 : index
    %c0_23 = arith.constant 0 : index
    %86 = vector.load %arg12[%c3, %c0_23] : memref<8x32xf32, #tpu.memory_space<vmem>>, vector<1x32xf32>
    tpu.vector_store %arg12[%c3, %c0_23], %85 {strides = array<i32>} : memref<8x32xf32, #tpu.memory_space<vmem>>, vector<1x32xf32>,
    %87 = vector.extract_strided_slice %7 {offsets = [4, 0], sizes = [1, 128], strides = [1, 1]} : vector<8x128xf32> to vector<1x128xf32>
    %cst_24 = arith.constant dense<0.000000e+00> : vector<1x128xf32>
    %88 = tpu.matmul %85, %8, %cst_24 {dimension_numbers = #tpu.dot_dimension_numbers<[1], [0], [0], [1], [0, 0, 1, 1], [], []>} : vector<1x32xf32>, vector<32x128xf32>, vector<1x128xf32> -> vector<1x128xf32>
    %89 = arith.addf %87, %88 : vector<1x128xf32>
    %90 = arith.negf %89 : vector<1x128xf32>
    %91 = math.exp %90 : vector<1x128xf32>
    %cst_25 = arith.constant 1.000000e+00 : f32
    %92 = vector.broadcast %cst_25 : f32 to vector<1x128xf32>
    %93 = arith.addf %92, %91 : vector<1x128xf32>
    %94 = arith.divf %92, %93 : vector<1x128xf32>
    %95 = math.tanh %89 : vector<1x128xf32>
    %96 = vector.extract_strided_slice %94 {offsets = [0, 0], sizes = [1, 32], strides = [1, 1]} : vector<1x128xf32> to vector<1x32xf32>
    %97 = vector.extract_strided_slice %94 {offsets = [0, 32], sizes = [1, 32], strides = [1, 1]} : vector<1x128xf32> to vector<1x32xf32>
    %98 = vector.extract_strided_slice %95 {offsets = [0, 64], sizes = [1, 32], strides = [1, 1]} : vector<1x128xf32> to vector<1x32xf32>
    %99 = vector.extract_strided_slice %94 {offsets = [0, 96], sizes = [1, 32], strides = [1, 1]} : vector<1x128xf32> to vector<1x32xf32>
    %100 = arith.mulf %97, %83 : vector<1x32xf32>
    %101 = arith.mulf %96, %98 : vector<1x32xf32>
    %102 = arith.addf %100, %101 : vector<1x32xf32>
    %103 = math.tanh %102 : vector<1x32xf32>
    %104 = arith.mulf %99, %103 : vector<1x32xf32>
    %c4 = arith.constant 4 : index
    %c0_26 = arith.constant 0 : index
    %105 = vector.load %arg12[%c4, %c0_26] : memref<8x32xf32, #tpu.memory_space<vmem>>, vector<1x32xf32>
    tpu.vector_store %arg12[%c4, %c0_26], %104 {strides = array<i32>} : memref<8x32xf32, #tpu.memory_space<vmem>>, vector<1x32xf32>,
    %106 = vector.extract_strided_slice %7 {offsets = [5, 0], sizes = [1, 128], strides = [1, 1]} : vector<8x128xf32> to vector<1x128xf32>
    %cst_27 = arith.constant dense<0.000000e+00> : vector<1x128xf32>
    %107 = tpu.matmul %104, %8, %cst_27 {dimension_numbers = #tpu.dot_dimension_numbers<[1], [0], [0], [1], [0, 0, 1, 1], [], []>} : vector<1x32xf32>, vector<32x128xf32>, vector<1x128xf32> -> vector<1x128xf32>
    %108 = arith.addf %106, %107 : vector<1x128xf32>
    %109 = arith.negf %108 : vector<1x128xf32>
    %110 = math.exp %109 : vector<1x128xf32>
    %cst_28 = arith.constant 1.000000e+00 : f32
    %111 = vector.broadcast %cst_28 : f32 to vector<1x128xf32>
    %112 = arith.addf %111, %110 : vector<1x128xf32>
    %113 = arith.divf %111, %112 : vector<1x128xf32>
    %114 = math.tanh %108 : vector<1x128xf32>
    %115 = vector.extract_strided_slice %113 {offsets = [0, 0], sizes = [1, 32], strides = [1, 1]} : vector<1x128xf32> to vector<1x32xf32>
    %116 = vector.extract_strided_slice %113 {offsets = [0, 32], sizes = [1, 32], strides = [1, 1]} : vector<1x128xf32> to vector<1x32xf32>
    %117 = vector.extract_strided_slice %114 {offsets = [0, 64], sizes = [1, 32], strides = [1, 1]} : vector<1x128xf32> to vector<1x32xf32>
    %118 = vector.extract_strided_slice %113 {offsets = [0, 96], sizes = [1, 32], strides = [1, 1]} : vector<1x128xf32> to vector<1x32xf32>
    %119 = arith.mulf %116, %102 : vector<1x32xf32>
    %120 = arith.mulf %115, %117 : vector<1x32xf32>
    %121 = arith.addf %119, %120 : vector<1x32xf32>
    %122 = math.tanh %121 : vector<1x32xf32>
    %123 = arith.mulf %118, %122 : vector<1x32xf32>
    %c5 = arith.constant 5 : index
    %c0_29 = arith.constant 0 : index
    %124 = vector.load %arg12[%c5, %c0_29] : memref<8x32xf32, #tpu.memory_space<vmem>>, vector<1x32xf32>
    tpu.vector_store %arg12[%c5, %c0_29], %123 {strides = array<i32>} : memref<8x32xf32, #tpu.memory_space<vmem>>, vector<1x32xf32>,
    %125 = vector.extract_strided_slice %7 {offsets = [6, 0], sizes = [1, 128], strides = [1, 1]} : vector<8x128xf32> to vector<1x128xf32>
    %cst_30 = arith.constant dense<0.000000e+00> : vector<1x128xf32>
    %126 = tpu.matmul %123, %8, %cst_30 {dimension_numbers = #tpu.dot_dimension_numbers<[1], [0], [0], [1], [0, 0, 1, 1], [], []>} : vector<1x32xf32>, vector<32x128xf32>, vector<1x128xf32> -> vector<1x128xf32>
    %127 = arith.addf %125, %126 : vector<1x128xf32>
    %128 = arith.negf %127 : vector<1x128xf32>
    %129 = math.exp %128 : vector<1x128xf32>
    %cst_31 = arith.constant 1.000000e+00 : f32
    %130 = vector.broadcast %cst_31 : f32 to vector<1x128xf32>
    %131 = arith.addf %130, %129 : vector<1x128xf32>
    %132 = arith.divf %130, %131 : vector<1x128xf32>
    %133 = math.tanh %127 : vector<1x128xf32>
    %134 = vector.extract_strided_slice %132 {offsets = [0, 0], sizes = [1, 32], strides = [1, 1]} : vector<1x128xf32> to vector<1x32xf32>
    %135 = vector.extract_strided_slice %132 {offsets = [0, 32], sizes = [1, 32], strides = [1, 1]} : vector<1x128xf32> to vector<1x32xf32>
    %136 = vector.extract_strided_slice %133 {offsets = [0, 64], sizes = [1, 32], strides = [1, 1]} : vector<1x128xf32> to vector<1x32xf32>
    %137 = vector.extract_strided_slice %132 {offsets = [0, 96], sizes = [1, 32], strides = [1, 1]} : vector<1x128xf32> to vector<1x32xf32>
    %138 = arith.mulf %135, %121 : vector<1x32xf32>
    %139 = arith.mulf %134, %136 : vector<1x32xf32>
    %140 = arith.addf %138, %139 : vector<1x32xf32>
    %141 = math.tanh %140 : vector<1x32xf32>
    %142 = arith.mulf %137, %141 : vector<1x32xf32>
    %c6 = arith.constant 6 : index
    %c0_32 = arith.constant 0 : index
    %143 = vector.load %arg12[%c6, %c0_32] : memref<8x32xf32, #tpu.memory_space<vmem>>, vector<1x32xf32>
    tpu.vector_store %arg12[%c6, %c0_32], %142 {strides = array<i32>} : memref<8x32xf32, #tpu.memory_space<vmem>>, vector<1x32xf32>,
    %144 = vector.extract_strided_slice %7 {offsets = [7, 0], sizes = [1, 128], strides = [1, 1]} : vector<8x128xf32> to vector<1x128xf32>
    %cst_33 = arith.constant dense<0.000000e+00> : vector<1x128xf32>
    %145 = tpu.matmul %142, %8, %cst_33 {dimension_numbers = #tpu.dot_dimension_numbers<[1], [0], [0], [1], [0, 0, 1, 1], [], []>} : vector<1x32xf32>, vector<32x128xf32>, vector<1x128xf32> -> vector<1x128xf32>
    %146 = arith.addf %144, %145 : vector<1x128xf32>
    %147 = arith.negf %146 : vector<1x128xf32>
    %148 = math.exp %147 : vector<1x128xf32>
    %cst_34 = arith.constant 1.000000e+00 : f32
    %149 = vector.broadcast %cst_34 : f32 to vector<1x128xf32>
    %150 = arith.addf %149, %148 : vector<1x128xf32>
    %151 = arith.divf %149, %150 : vector<1x128xf32>
    %152 = math.tanh %146 : vector<1x128xf32>
    %153 = vector.extract_strided_slice %151 {offsets = [0, 0], sizes = [1, 32], strides = [1, 1]} : vector<1x128xf32> to vector<1x32xf32>
    %154 = vector.extract_strided_slice %151 {offsets = [0, 32], sizes = [1, 32], strides = [1, 1]} : vector<1x128xf32> to vector<1x32xf32>
    %155 = vector.extract_strided_slice %152 {offsets = [0, 64], sizes = [1, 32], strides = [1, 1]} : vector<1x128xf32> to vector<1x32xf32>
    %156 = vector.extract_strided_slice %151 {offsets = [0, 96], sizes = [1, 32], strides = [1, 1]} : vector<1x128xf32> to vector<1x32xf32>
    %157 = arith.mulf %154, %140 : vector<1x32xf32>
    %158 = arith.mulf %153, %155 : vector<1x32xf32>
    %159 = arith.addf %157, %158 : vector<1x32xf32>
    %160 = math.tanh %159 : vector<1x32xf32>
    %161 = arith.mulf %156, %160 : vector<1x32xf32>
    %c7 = arith.constant 7 : index
    %c0_35 = arith.constant 0 : index
    %162 = vector.load %arg12[%c7, %c0_35] : memref<8x32xf32, #tpu.memory_space<vmem>>, vector<1x32xf32>
    tpu.vector_store %arg12[%c7, %c0_35], %161 {strides = array<i32>} : memref<8x32xf32, #tpu.memory_space<vmem>>, vector<1x32xf32>,
    %c0_36 = arith.constant 0 : index
    %c0_37 = arith.constant 0 : index
    %163 = vector.load %arg12[%c0_36, %c0_37] : memref<8x32xf32, #tpu.memory_space<vmem>>, vector<8x32xf32>
    %c0_38 = arith.constant 0 : index
    %c0_39 = arith.constant 0 : index
    %164 = vector.load %arg6[%c0_38, %c0_39] : memref<32x4xf32, #tpu.memory_space<vmem>>, vector<32x4xf32>
    %cst_40 = arith.constant dense<0.000000e+00> : vector<8x4xf32>
    %165 = tpu.matmul %163, %164, %cst_40 {dimension_numbers = #tpu.dot_dimension_numbers<[1], [0], [0], [1], [0, 0, 1, 1], [], []>} : vector<8x32xf32>, vector<32x4xf32>, vector<8x4xf32> -> vector<8x4xf32>
    %c0_41 = arith.constant 0 : index
    %c0_42 = arith.constant 0 : index
    %166 = vector.load %arg7[%c0_41, %c0_42] : memref<1x4xf32, #tpu.memory_space<vmem>>, vector<1x4xf32>
    %167 = vector.broadcast %166 : vector<1x4xf32> to vector<8x4xf32>
    %168 = arith.addf %165, %167 : vector<8x4xf32>
    %c0_43 = arith.constant 0 : index
    %169 = memref.load %arg0[%c0_43] : memref<1xf32, #tpu.memory_space<smem>>
    %170 = vector.broadcast %169 : f32 to vector<8x4xf32>
    %171 = arith.mulf %168, %170 : vector<8x4xf32>
    %cst_44 = arith.constant dense<0xFF800000> : vector<4xf32>
    %172 = vector.multi_reduction <maximumf>, %171, %cst_44 [0] : vector<8x4xf32> to vector<4xf32>
    %173 = vector.shape_cast %172 : vector<4xf32> to vector<1x4xf32>
    %174 = vector.broadcast %173 : vector<1x4xf32> to vector<8x4xf32>
    %175 = arith.subf %171, %174 : vector<8x4xf32>
    %176 = math.exp %175 : vector<8x4xf32>
    %cst_45 = arith.constant dense<0.000000e+00> : vector<4xf32>
    %177 = vector.multi_reduction <add>, %176, %cst_45 [0] : vector<8x4xf32> to vector<4xf32>
    %178 = vector.shape_cast %177 : vector<4xf32> to vector<1x4xf32>
    %179 = vector.broadcast %178 : vector<1x4xf32> to vector<8x4xf32>
    %180 = arith.divf %176, %179 : vector<8x4xf32>
    %c0_46 = arith.constant 0 : index
    %c0_47 = arith.constant 0 : index
    %181 = vector.load %arg10[%c0_46, %c0_47] : memref<8x4xf32, #tpu.memory_space<vmem>>, vector<8x4xf32>
    tpu.vector_store %arg10[%c0_46, %c0_47], %180 {strides = array<i32>} : memref<8x4xf32, #tpu.memory_space<vmem>>, vector<8x4xf32>,
    %c0_48 = arith.constant 0 : index
    %c0_49 = arith.constant 0 : index
    %182 = vector.load %arg1[%c0_48, %c0_49] : memref<8x16xf32, #tpu.memory_space<vmem>>, vector<8x16xf32>
    %c0_50 = arith.constant 0 : index
    %c0_51 = arith.constant 0 : index
    %183 = vector.load %arg8[%c0_50, %c0_51] : memref<1x16xf32, #tpu.memory_space<vmem>>, vector<1x16xf32>
    %184 = vector.broadcast %183 : vector<1x16xf32> to vector<8x16xf32>
    %185 = arith.mulf %182, %184 : vector<8x16xf32>
    %cst_52 = arith.constant dense<0.000000e+00> : vector<8xf32>
    %186 = vector.multi_reduction <add>, %185, %cst_52 [1] : vector<8x16xf32> to vector<8xf32>
    %187 = vector.shape_cast %186 : vector<8xf32> to vector<8x1xf32>
    %c0_53 = arith.constant 0 : index
    %c0_54 = arith.constant 0 : index
    %188 = vector.load %arg9[%c0_53, %c0_54] : memref<1x1xf32, #tpu.memory_space<vmem>>, vector<1x1xf32>
    %189 = vector.broadcast %188 : vector<1x1xf32> to vector<8x1xf32>
    %190 = arith.addf %187, %189 : vector<8x1xf32>
    %c0_55 = arith.constant 0 : index
    %c0_56 = arith.constant 0 : index
    %191 = vector.load %arg11[%c0_55, %c0_56] : memref<8x1xf32, #tpu.memory_space<vmem>>, vector<8x1xf32>
    tpu.vector_store %arg11[%c0_55, %c0_56], %190 {strides = array<i32>} : memref<8x1xf32, #tpu.memory_space<vmem>>, vector<8x1xf32>,
    return
  }
}

</mosaic_0001>

<llo_original>
// kernel: tpu_custom_call.1
$region0: #{tpu_custom_call.1}
  #allocation0 [shape = 'u32[]', space=smem, size = 0x4, offset = 0x4, fixed_abs, tag = 'smem constant byte address 0x4 - core index']
  #allocation1 [shape = 'u32[144,128]{1,0:T(1,128)}', space=vmem, size = 0x12000, scoped, tag = 'internal scratch']
  #allocation2 [shape = 'f32[8,32]{1,0:T(8,128)}', space=vmem, size = 0x1000, scoped, tag = 'scratch operand']
  #allocation3 [shape = 'f32[1]{0:T(128)S(6)}', space=smem, size = 0x200, scoped, tag = 'scoped memory for tpu_custom_call.1']
  #allocation4 [shape = 'f32[1,1]{1,0:T(1,128)S(1)}', space=vmem, size = 0x200, scoped, tag = 'scoped memory for tpu_custom_call.1']
  %s0 = inlined_call_operand.<no memory space> [shape: f32[1], index: 0, kind: input, shape index: {}]
  %s1 = inlined_call_operand.hbm [shape: f32[8,16], index: 1, kind: input, shape index: {}]
  %s2 = inlined_call_operand.vmem [shape: f32[16,128], index: 2, kind: input, shape index: {}]
  %s3 = inlined_call_operand.vmem [shape: f32[32,128], index: 3, kind: input, shape index: {}]
  %s4 = inlined_call_operand.vmem [shape: f32[1,128], index: 4, kind: input, shape index: {}]
  %s5 = inlined_call_operand.vmem [shape: f32[1,128], index: 5, kind: input, shape index: {}]
  %s6 = inlined_call_operand.vmem [shape: f32[32,4], index: 6, kind: input, shape index: {}]
  %s7 = inlined_call_operand.vmem [shape: f32[1,4], index: 7, kind: input, shape index: {}]
  %s8 = inlined_call_operand.vmem [shape: f32[1,16], index: 8, kind: input, shape index: {}]
  %s9 = inlined_call_operand.<no memory space> [shape: f32[1,1], index: 9, kind: input, shape index: {}]
  %s10 = inlined_call_operand.vmem [shape: f32[8,4], index: 10, kind: output, shape index: {0}]
  %s11 = inlined_call_operand.vmem [shape: f32[8,1], index: 11, kind: output, shape index: {1}]
  %12 = xla_tuple %s10, %s11
  %s13 = sld [smem:[#allocation0]]
  $region62: #{tpu_custom_call.1} parent=0
    _
  %s15 = ssub.s32 1, %s13
  %s16 = scalar_select 0, %s15, %s13
  %17 = sst [smem:[#allocation3]] %s0
  %v18 = vstv %s9
  %19 = vst [vmem:[#allocation4] sm:$0x1] %v18
  $region1: #{tpu_custom_call.1} parent=0
    #allocation5 [shape = 'u8[4096]{0}', space=vmem, size = 0x1000, scoped, tag = 'input window, operand 1, single buffered']
    #allocation6 [shape = 's32[1]{0}', space=sflag, size = 0x4, scoped, tag = 'scoped memory for tpu_custom_call.1']
    %20 = vsyncpa [#allocation6], 0
    // Predicated region
    $region2: #{tpu_custom_call.1} parent=1 // pred_check
      _
    $region3: #{tpu_custom_call.1} parent=1 // pred_check_branch
      %22 = sbr.rel (0) target = $region5
    $region4: #{tpu_custom_call.1} parent=1 // pred_region
      _
    $region5: #{tpu_custom_call.1} parent=1 // pred_fallthru
      _
    // Predicated region
    $region6: #{tpu_custom_call.1} parent=1 // pred_check
      _
    $region7: #{tpu_custom_call.1} parent=1 // pred_check_branch
      %24 = sbr.rel (0) target = $region9
    $region8: #{tpu_custom_call.1} parent=1 // pred_region
      %s26 = ssub.s32 128, 128
      %27 = vsyncadd [#allocation6], %s26
      %s29 = sshll.u32 [#allocation5], 4
      %s30 = int_to_ptr.vmem [resolvable:$true] %s29
      %32 = dma.hbm_to_vmem [thread:$0]  %s1, 128, %s30, [#allocation6]
    $region9: #{tpu_custom_call.1} parent=1 // pred_fallthru
      _
    // Predicated region
    $region10: #{tpu_custom_call.1} parent=1 // pred_check
      _
    $region11: #{tpu_custom_call.1} parent=1 // pred_check_branch
      %34 = sbr.rel (0) target = $region13
    $region12: #{tpu_custom_call.1} parent=1 // pred_region
      _
    $region13: #{tpu_custom_call.1} parent=1 // pred_fallthru
      _
    // Predicated region
    $region14: #{tpu_custom_call.1} parent=1 // pred_check
      _
    $region15: #{tpu_custom_call.1} parent=1 // pred_check_branch
      %36 = sbr.rel (0) target = $region17
    $region16: #{tpu_custom_call.1} parent=1 // pred_region
      _
    $region17: #{tpu_custom_call.1} parent=1 // pred_fallthru
      _
    // Predicated region
    $region18: #{tpu_custom_call.1} parent=1 // pred_check
      _
    $region19: #{tpu_custom_call.1} parent=1 // pred_check_branch
      %38 = sbr.rel (0) target = $region21
    $region20: #{tpu_custom_call.1} parent=1 // pred_region
      _
    $region21: #{tpu_custom_call.1} parent=1 // pred_fallthru
      _
    // Predicated region
    $region22: #{tpu_custom_call.1} parent=1 // pred_check
      _
    $region23: #{tpu_custom_call.1} parent=1 // pred_check_branch
      %40 = sbr.rel (0) target = $region25
    $region24: #{tpu_custom_call.1} parent=1 // pred_region
      _
    $region25: #{tpu_custom_call.1} parent=1 // pred_fallthru
      _
    // Predicated region
    $region26: #{tpu_custom_call.1} parent=1 // pred_check
      _
    $region27: #{tpu_custom_call.1} parent=1 // pred_check_branch
      %42 = sbr.rel (0) target = $region29
    $region28: #{tpu_custom_call.1} parent=1 // pred_region
      _
    $region29: #{tpu_custom_call.1} parent=1 // pred_fallthru
      _
    // Predicated region
    $region30: #{tpu_custom_call.1} parent=1 // pred_check
      _
    $region31: #{tpu_custom_call.1} parent=1 // pred_check_branch
      %44 = sbr.rel (0) target = $region33
    $region32: #{tpu_custom_call.1} parent=1 // pred_region
      _
    $region33: #{tpu_custom_call.1} parent=1 // pred_fallthru
      _
    // Predicated region
    $region34: #{tpu_custom_call.1} parent=1 // pred_check
      _
    $region35: #{tpu_custom_call.1} parent=1 // pred_check_branch
      %46 = sbr.rel (0) target = $region37
    $region36: #{tpu_custom_call.1} parent=1 // pred_region
      _
    $region37: #{tpu_custom_call.1} parent=1 // pred_fallthru
      _
    // Predicated region
    $region38: #{tpu_custom_call.1} parent=1 // pred_check
      _
    $region39: #{tpu_custom_call.1} parent=1 // pred_check_branch
      %48 = sbr.rel (0) target = $region41
    $region40: #{tpu_custom_call.1} parent=1 // pred_region
      _
    $region41: #{tpu_custom_call.1} parent=1 // pred_fallthru
      _
    // Predicated region
    $region42: #{tpu_custom_call.1} parent=1 // pred_check
      _
    $region43: #{tpu_custom_call.1} parent=1 // pred_check_branch
      %50 = sbr.rel (0) target = $region45
    $region44: #{tpu_custom_call.1} parent=1 // pred_region
      %51 = dma.done [#allocation6], 128
    $region45: #{tpu_custom_call.1} parent=1 // pred_fallthru
      _
    %v52 = vld [vmem:[#allocation5] sm:$0xff]
    %v53 = vld [vmem:[%s2] sm:$0xff]
    %v54 = vld [vmem:[%s2 + $0x8] sm:$0xff]
    %v55 = vld [vmem:[%s4] sm:$0x1]
    %v56 = vld [vmem:[%s5] sm:$0x1]
    %v57 = vadd.f32 %v55, %v56
    %v59 = vlaneseq
    %v60 = vshrl.u32 %v59, 7
    %v61 = vsub.s32 0, %v60
    %v62 = vrot.slane %v57, %v61
    %vm64 = vcmask 130048
    %v66 = vsel %vm64, %v52, 0
    %68 = vmatprep.subr.mxu0 0.0
    %69 = vmatpush1.msra.mxu0 %v53
    %70 = vmatprep.subr.mxu0 0.0
    %71 = vmatpush1.msra.mxu0 %v54
    %72 = vmatprep.subr.mxu0 0.0
    %73 = vmatpush1.msra.mxu0 0.0
    %74 = vmatprep.subr.mxu0 0.0
    %75 = vmatpush1.msra.mxu0 0.0
    %76 = vmatprep.subr.mxu0 0.0
    %77 = vmatpush1.msra.mxu0 0.0
    %78 = vmatprep.subr.mxu0 0.0
    %79 = vmatpush1.msra.mxu0 0.0
    %80 = vmatprep.subr.mxu0 0.0
    %81 = vmatpush1.msra.mxu0 0.0
    %82 = vmatprep.subr.mxu0 0.0
    %83 = vmatpush1.msra.mxu0 0.0
    %84 = vmatprep.subr.mxu0 0.0
    %85 = vmatpush1.msra.mxu0 0.0
    %86 = vmatprep.subr.mxu0 0.0
    %87 = vmatpush1.msra.mxu0 0.0
    %88 = vmatprep.subr.mxu0 0.0
    %89 = vmatpush1.msra.mxu0 0.0
    %90 = vmatprep.subr.mxu0 0.0
    %91 = vmatpush1.msra.mxu0 0.0
    %92 = vmatprep.subr.mxu0 0.0
    %93 = vmatpush1.msra.mxu0 0.0
    %94 = vmatprep.subr.mxu0 0.0
    %95 = vmatpush1.msra.mxu0 0.0
    %96 = vmatprep.subr.mxu0 0.0
    %97 = vmatpush1.msra.mxu0 0.0
    %98 = vmatprep.subr.mxu0 0.0
    %99 = vmatpush1.msra.mxu0 0.0
    %100 = vmatprep.subr.mxu0 0.0
    %101 = vmatpush1.msra.mxu0 0.0
    %102 = vmatprep.subr.mxu0 0.0
    %103 = vmatpush1.msra.mxu0 0.0
    %104 = vmatprep.subr.mxu0 0.0
    %105 = vmatpush1.msra.mxu0 0.0
    %106 = vmatprep.subr.mxu0 0.0
    %107 = vmatpush1.msra.mxu0 0.0
    %108 = vmatprep.subr.mxu0 0.0
    %109 = vmatpush1.msra.mxu0 0.0
    %110 = vmatprep.subr.mxu0 0.0
    %111 = vmatpush1.msra.mxu0 0.0
    %112 = vmatprep.subr.mxu0 0.0
    %113 = vmatpush1.msra.mxu0 0.0
    %114 = vmatprep.subr.mxu0 0.0
    %115 = vmatpush1.msra.mxu0 0.0
    %116 = vmatprep.subr.mxu0 0.0
    %117 = vmatpush1.msra.mxu0 0.0
    %118 = vmatprep.subr.mxu0 0.0
    %119 = vmatpush1.msra.mxu0 0.0
    %120 = vmatprep.subr.mxu0 0.0
    %121 = vmatpush1.msra.mxu0 0.0
    %122 = vmatprep.subr.mxu0 0.0
    %123 = vmatpush1.msra.mxu0 0.0
    %124 = vmatprep.subr.mxu0 0.0
    %125 = vmatpush1.msra.mxu0 0.0
    %126 = vmatprep.subr.mxu0 0.0
    %127 = vmatpush1.msra.mxu0 0.0
    %128 = vmatprep.subr.mxu0 0.0
    %129 = vmatpush1.msra.mxu0 0.0
    %130 = vmatprep.subr.mxu0 0.0
    %131 = vmatpush1.msra.mxu0 0.0
    %132 = vmatprep.mubr.f32.mxu0 0.0
    %133 = vmatmul.mubr.f32.gmra.mrb[0].mxu0 %v66
    %v134 = vpop.f32.mrb[0].mxu0
    %v135 = vadd.f32 %v62, %v134
    %v136 = vpop.f32.mrb[0].mxu0
    %137 = vdwg.mxu0
    %v138 = vld [vmem:[%s3] sm:$0xff]
    %v139 = vld [vmem:[%s3 + $0x8] sm:$0xff]
    %v140 = vld [vmem:[%s3 + $0x10] sm:$0xff]
    %v141 = vld [vmem:[%s3 + $0x18] sm:$0xff]
    %vm142 = vcmask 261120
    %v144 = vsel %vm142, 0.0, 0
    %146 = vmatprep.subr.mxu0 0.0
    %147 = vmatpush1.msra.mxu0 %v138
    %148 = vmatprep.subr.mxu0 0.0
    %149 = vmatpush1.msra.mxu0 %v139
    %150 = vmatprep.subr.mxu0 0.0
    %151 = vmatpush1.msra.mxu0 %v140
    %152 = vmatprep.subr.mxu0 0.0
    %153 = vmatpush1.msra.mxu0 %v141
    %154 = vmatprep.subr.mxu0 0.0
    %155 = vmatpush1.msra.mxu0 0.0
    %156 = vmatprep.subr.mxu0 0.0
    %157 = vmatpush1.msra.mxu0 0.0
    %158 = vmatprep.subr.mxu0 0.0
    %159 = vmatpush1.msra.mxu0 0.0
    %160 = vmatprep.subr.mxu0 0.0
    %161 = vmatpush1.msra.mxu0 0.0
    %162 = vmatprep.subr.mxu0 0.0
    %163 = vmatpush1.msra.mxu0 0.0
    %164 = vmatprep.subr.mxu0 0.0
    %165 = vmatpush1.msra.mxu0 0.0
    %166 = vmatprep.subr.mxu0 0.0
    %167 = vmatpush1.msra.mxu0 0.0
    %168 = vmatprep.subr.mxu0 0.0
    %169 = vmatpush1.msra.mxu0 0.0
    %170 = vmatprep.subr.mxu0 0.0
    %171 = vmatpush1.msra.mxu0 0.0
    %172 = vmatprep.subr.mxu0 0.0
    %173 = vmatpush1.msra.mxu0 0.0
    %174 = vmatprep.subr.mxu0 0.0
    %175 = vmatpush1.msra.mxu0 0.0
    %176 = vmatprep.subr.mxu0 0.0
    %177 = vmatpush1.msra.mxu0 0.0
    %178 = vmatprep.subr.mxu0 0.0
    %179 = vmatpush1.msra.mxu0 0.0
    %180 = vmatprep.subr.mxu0 0.0
    %181 = vmatpush1.msra.mxu0 0.0
    %182 = vmatprep.subr.mxu0 0.0
    %183 = vmatpush1.msra.mxu0 0.0
    %184 = vmatprep.subr.mxu0 0.0
    %185 = vmatpush1.msra.mxu0 0.0
    %186 = vmatprep.subr.mxu0 0.0
    %187 = vmatpush1.msra.mxu0 0.0
    %188 = vmatprep.subr.mxu0 0.0
    %189 = vmatpush1.msra.mxu0 0.0
    %190 = vmatprep.subr.mxu0 0.0
    %191 = vmatpush1.msra.mxu0 0.0
    %192 = vmatprep.subr.mxu0 0.0
    %193 = vmatpush1.msra.mxu0 0.0
    %194 = vmatprep.subr.mxu0 0.0
    %195 = vmatpush1.msra.mxu0 0.0
    %196 = vmatprep.subr.mxu0 0.0
    %197 = vmatpush1.msra.mxu0 0.0
    %198 = vmatprep.subr.mxu0 0.0
    %199 = vmatpush1.msra.mxu0 0.0
    %200 = vmatprep.subr.mxu0 0.0
    %201 = vmatpush1.msra.mxu0 0.0
    %202 = vmatprep.subr.mxu0 0.0
    %203 = vmatpush1.msra.mxu0 0.0
    %204 = vmatprep.subr.mxu0 0.0
    %205 = vmatpush1.msra.mxu0 0.0
    %206 = vmatprep.subr.mxu0 0.0
    %207 = vmatpush1.msra.mxu0 0.0
    %208 = vmatprep.subr.mxu0 0.0
    %209 = vmatpush1.msra.mxu0 0.0
    %210 = vmatprep.mubr.f32.mxu0 0.0
    %211 = vmatmul.mubr.f32.gmra.mrb[0].mxu0 %v144
    %v212 = vpop.f32.mrb[0].mxu0
    %v213 = vadd.f32 0.0, %v212
    %v214 = vpop.f32.mrb[0].mxu0
    %215 = vdwg.mxu0
    %v216 = vadd.f32 %v135, %v213
    %v217 = vxor.u32 %v216, 2147483648
    %v218 = vmul.f32 %v217, 1.442695
    %v219 = vpow.pop %v218
    %v220 = vadd.f32 %v219, 1.0
    %v221 = vrcp.pop %v220
    %v222 = vmul.f32 1.0, %v221
    %v223 = vtanh.pop %v216
    %v224 = vmul.f32 %v222, 0.0
    %226 = vrot.lane.b32.xlu0 %v223, 64
    %v227 = vpop.permute.xlu0 %226
    %v229 = vmul.f32 %v222, %v227
    %231 = vrot.lane.b32.xlu0 %v229, 32
    %v232 = vpop.permute.xlu0 %231
    %v234 = vadd.f32 %v224, %v232
    %v235 = vtanh.pop %v234
    %237 = vrot.lane.b32.xlu0 %v235, 64
    %v238 = vpop.permute.xlu0 %237
    %v240 = vmul.f32 %v222, %v238
    %242 = vrot.lane.b32.xlu0 %v240, 32
    %v243 = vpop.permute.xlu0 %242
    %vm245 = vcmask 253952
    %246 = vst.msk [vmem:[#allocation2] sm:$0x1] %vm245, %v243
    %v247 = vsel %vm142, %v243, 0
    %249 = vmatprep.subr.mxu0 0.0
    %250 = vmatpush1.msra.mxu0 %v138
    %251 = vmatprep.subr.mxu0 0.0
    %252 = vmatpush1.msra.mxu0 %v139
    %253 = vmatprep.subr.mxu0 0.0
    %254 = vmatpush1.msra.mxu0 %v140
    %255 = vmatprep.subr.mxu0 0.0
    %256 = vmatpush1.msra.mxu0 %v141
    %257 = vmatprep.subr.mxu0 0.0
    %258 = vmatpush1.msra.mxu0 0.0
    %259 = vmatprep.subr.mxu0 0.0
    %260 = vmatpush1.msra.mxu0 0.0
    %261 = vmatprep.subr.mxu0 0.0
    %262 = vmatpush1.msra.mxu0 0.0
    %263 = vmatprep.subr.mxu0 0.0
    %264 = vmatpush1.msra.mxu0 0.0
    %265 = vmatprep.subr.mxu0 0.0
    %266 = vmatpush1.msra.mxu0 0.0
    %267 = vmatprep.subr.mxu0 0.0
    %268 = vmatpush1.msra.mxu0 0.0
    %269 = vmatprep.subr.mxu0 0.0
    %270 = vmatpush1.msra.mxu0 0.0
    %271 = vmatprep.subr.mxu0 0.0
    %272 = vmatpush1.msra.mxu0 0.0
    %273 = vmatprep.subr.mxu0 0.0
    %274 = vmatpush1.msra.mxu0 0.0
    %275 = vmatprep.subr.mxu0 0.0
    %276 = vmatpush1.msra.mxu0 0.0
    %277 = vmatprep.subr.mxu0 0.0
    %278 = vmatpush1.msra.mxu0 0.0
    %279 = vmatprep.subr.mxu0 0.0
    %280 = vmatpush1.msra.mxu0 0.0
    %281 = vmatprep.subr.mxu0 0.0
    %282 = vmatpush1.msra.mxu0 0.0
    %283 = vmatprep.subr.mxu0 0.0
    %284 = vmatpush1.msra.mxu0 0.0
    %285 = vmatprep.subr.mxu0 0.0
    %286 = vmatpush1.msra.mxu0 0.0
    %287 = vmatprep.subr.mxu0 0.0
    %288 = vmatpush1.msra.mxu0 0.0
    %289 = vmatprep.subr.mxu0 0.0
    %290 = vmatpush1.msra.mxu0 0.0
    %291 = vmatprep.subr.mxu0 0.0
    %292 = vmatpush1.msra.mxu0 0.0
    %293 = vmatprep.subr.mxu0 0.0
    %294 = vmatpush1.msra.mxu0 0.0
    %295 = vmatprep.subr.mxu0 0.0
    %296 = vmatpush1.msra.mxu0 0.0
    %297 = vmatprep.subr.mxu0 0.0
    %298 = vmatpush1.msra.mxu0 0.0
    %299 = vmatprep.subr.mxu0 0.0
    %300 = vmatpush1.msra.mxu0 0.0
    %301 = vmatprep.subr.mxu0 0.0
    %302 = vmatpush1.msra.mxu0 0.0
    %303 = vmatprep.subr.mxu0 0.0
    %304 = vmatpush1.msra.mxu0 0.0
    %305 = vmatprep.subr.mxu0 0.0
    %306 = vmatpush1.msra.mxu0 0.0
    %307 = vmatprep.subr.mxu0 0.0
    %308 = vmatpush1.msra.mxu0 0.0
    %309 = vmatprep.subr.mxu0 0.0
    %310 = vmatpush1.msra.mxu0 0.0
    %311 = vmatprep.subr.mxu0 0.0
    %312 = vmatpush1.msra.mxu0 0.0
    %313 = vmatprep.mubr.f32.mxu0 0.0
    %314 = vmatmul.mubr.f32.gmra.mrb[0].mxu0 %v247
    %v315 = vpop.f32.mrb[0].mxu0
    %v316 = vadd.f32 0.0, %v315
    %v317 = vpop.f32.mrb[0].mxu0
    %318 = vdwg.mxu0
    %v320 = vrot.slane %v316, 7
    %v322 = vadd.f32 %v135, %v320
    %v323 = vxor.u32 %v322, 2147483648
    %v324 = vmul.f32 %v323, 1.442695
    %v325 = vpow.pop %v324
    %v326 = vadd.f32 %v325, 1.0
    %v327 = vrcp.pop %v326
    %v328 = vmul.f32 1.0, %v327
    %v329 = vtanh.pop %v322
    %v331 = vrot.slane %v234, 7
    %v333 = vmul.f32 %v328, %v331
    %335 = vrot.lane.b32.xlu0 %v329, 64
    %v336 = vpop.permute.xlu0 %335
    %v338 = vmul.f32 %v328, %v336
    %340 = vrot.lane.b32.xlu0 %v338, 32
    %v341 = vpop.permute.xlu0 %340
    %v343 = vadd.f32 %v333, %v341
    %v344 = vtanh.pop %v343
    %346 = vrot.lane.b32.xlu0 %v344, 64
    %v347 = vpop.permute.xlu0 %346
    %v349 = vmul.f32 %v328, %v347
    %351 = vrot.lane.b32.xlu0 %v349, 32
    %v352 = vpop.permute.xlu0 %351
    %vm354 = vcmask 254977
    %355 = vst.msk [vmem:[#allocation2] sm:$0x2] %vm354, %v352
    %v356 = vrot.slane %v349, 1
    %357 = vrot.lane.b32.xlu0 %v356, 32
    %v358 = vpop.permute.xlu0 %357
    %v359 = vsel %vm142, %v358, 0
    %361 = vmatprep.subr.mxu0 0.0
    %362 = vmatpush1.msra.mxu0 %v138
    %363 = vmatprep.subr.mxu0 0.0
    %364 = vmatpush1.msra.mxu0 %v139
    %365 = vmatprep.subr.mxu0 0.0
    %366 = vmatpush1.msra.mxu0 %v140
    %367 = vmatprep.subr.mxu0 0.0
    %368 = vmatpush1.msra.mxu0 %v141
    %369 = vmatprep.subr.mxu0 0.0
    %370 = vmatpush1.msra.mxu0 0.0
    %371 = vmatprep.subr.mxu0 0.0
    %372 = vmatpush1.msra.mxu0 0.0
    %373 = vmatprep.subr.mxu0 0.0
    %374 = vmatpush1.msra.mxu0 0.0
    %375 = vmatprep.subr.mxu0 0.0
    %376 = vmatpush1.msra.mxu0 0.0
    %377 = vmatprep.subr.mxu0 0.0
    %378 = vmatpush1.msra.mxu0 0.0
    %379 = vmatprep.subr.mxu0 0.0
    %380 = vmatpush1.msra.mxu0 0.0
    %381 = vmatprep.subr.mxu0 0.0
    %382 = vmatpush1.msra.mxu0 0.0
    %383 = vmatprep.subr.mxu0 0.0
    %384 = vmatpush1.msra.mxu0 0.0
    %385 = vmatprep.subr.mxu0 0.0
    %386 = vmatpush1.msra.mxu0 0.0
    %387 = vmatprep.subr.mxu0 0.0
    %388 = vmatpush1.msra.mxu0 0.0
    %389 = vmatprep.subr.mxu0 0.0
    %390 = vmatpush1.msra.mxu0 0.0
    %391 = vmatprep.subr.mxu0 0.0
    %392 = vmatpush1.msra.mxu0 0.0
    %393 = vmatprep.subr.mxu0 0.0
    %394 = vmatpush1.msra.mxu0 0.0
    %395 = vmatprep.subr.mxu0 0.0
    %396 = vmatpush1.msra.mxu0 0.0
    %397 = vmatprep.subr.mxu0 0.0
    %398 = vmatpush1.msra.mxu0 0.0
    %399 = vmatprep.subr.mxu0 0.0
    %400 = vmatpush1.msra.mxu0 0.0
    %401 = vmatprep.subr.mxu0 0.0
    %402 = vmatpush1.msra.mxu0 0.0
    %403 = vmatprep.subr.mxu0 0.0
    %404 = vmatpush1.msra.mxu0 0.0
    %405 = vmatprep.subr.mxu0 0.0
    %406 = vmatpush1.msra.mxu0 0.0
    %407 = vmatprep.subr.mxu0 0.0
    %408 = vmatpush1.msra.mxu0 0.0
    %409 = vmatprep.subr.mxu0 0.0
    %410 = vmatpush1.msra.mxu0 0.0
    %411 = vmatprep.subr.mxu0 0.0
    %412 = vmatpush1.msra.mxu0 0.0
    %413 = vmatprep.subr.mxu0 0.0
    %414 = vmatpush1.msra.mxu0 0.0
    %415 = vmatprep.subr.mxu0 0.0
    %416 = vmatpush1.msra.mxu0 0.0
    %417 = vmatprep.subr.mxu0 0.0
    %418 = vmatpush1.msra.mxu0 0.0
    %419 = vmatprep.subr.mxu0 0.0
    %420 = vmatpush1.msra.mxu0 0.0
    %421 = vmatprep.subr.mxu0 0.0
    %422 = vmatpush1.msra.mxu0 0.0
    %423 = vmatprep.subr.mxu0 0.0
    %424 = vmatpush1.msra.mxu0 0.0
    %425 = vmatprep.mubr.f32.mxu0 0.0
    %426 = vmatmul.mubr.f32.gmra.mrb[0].mxu0 %v359
    %v427 = vpop.f32.mrb[0].mxu0
    %v428 = vadd.f32 0.0, %v427
    %v429 = vpop.f32.mrb[0].mxu0
    %430 = vdwg.mxu0
    %v432 = vrot.slane %v428, 6
    %v434 = vadd.f32 %v135, %v432
    %v435 = vxor.u32 %v434, 2147483648
    %v436 = vmul.f32 %v435, 1.442695
    %v437 = vpow.pop %v436
    %v438 = vadd.f32 %v437, 1.0
    %v439 = vrcp.pop %v438
    %v440 = vmul.f32 1.0, %v439
    %v441 = vtanh.pop %v434
    %v443 = vrot.slane %v343, 7
    %v445 = vmul.f32 %v440, %v443
    %447 = vrot.lane.b32.xlu0 %v441, 64
    %v448 = vpop.permute.xlu0 %447
    %v450 = vmul.f32 %v440, %v448
    %452 = vrot.lane.b32.xlu0 %v450, 32
    %v453 = vpop.permute.xlu0 %452
    %v455 = vadd.f32 %v445, %v453
    %v456 = vtanh.pop %v455
    %458 = vrot.lane.b32.xlu0 %v456, 64
    %v459 = vpop.permute.xlu0 %458
    %v461 = vmul.f32 %v440, %v459
    %463 = vrot.lane.b32.xlu0 %v461, 32
    %v464 = vpop.permute.xlu0 %463
    %vm466 = vcmask 256002
    %467 = vst.msk [vmem:[#allocation2] sm:$0x4] %vm466, %v464
    %v468 = vrot.slane %v461, 2
    %469 = vrot.lane.b32.xlu0 %v468, 32
    %v470 = vpop.permute.xlu0 %469
    %v471 = vsel %vm142, %v470, 0
    %473 = vmatprep.subr.mxu0 0.0
    %474 = vmatpush1.msra.mxu0 %v138
    %475 = vmatprep.subr.mxu0 0.0
    %476 = vmatpush1.msra.mxu0 %v139
    %477 = vmatprep.subr.mxu0 0.0
    %478 = vmatpush1.msra.mxu0 %v140
    %479 = vmatprep.subr.mxu0 0.0
    %480 = vmatpush1.msra.mxu0 %v141
    %481 = vmatprep.subr.mxu0 0.0
    %482 = vmatpush1.msra.mxu0 0.0
    %483 = vmatprep.subr.mxu0 0.0
    %484 = vmatpush1.msra.mxu0 0.0
    %485 = vmatprep.subr.mxu0 0.0
    %486 = vmatpush1.msra.mxu0 0.0
    %487 = vmatprep.subr.mxu0 0.0
    %488 = vmatpush1.msra.mxu0 0.0
    %489 = vmatprep.subr.mxu0 0.0
    %490 = vmatpush1.msra.mxu0 0.0
    %491 = vmatprep.subr.mxu0 0.0
    %492 = vmatpush1.msra.mxu0 0.0
    %493 = vmatprep.subr.mxu0 0.0
    %494 = vmatpush1.msra.mxu0 0.0
    %495 = vmatprep.subr.mxu0 0.0
    %496 = vmatpush1.msra.mxu0 0.0
    %497 = vmatprep.subr.mxu0 0.0
    %498 = vmatpush1.msra.mxu0 0.0
    %499 = vmatprep.subr.mxu0 0.0
    %500 = vmatpush1.msra.mxu0 0.0
    %501 = vmatprep.subr.mxu0 0.0
    %502 = vmatpush1.msra.mxu0 0.0
    %503 = vmatprep.subr.mxu0 0.0
    %504 = vmatpush1.msra.mxu0 0.0
    %505 = vmatprep.subr.mxu0 0.0
    %506 = vmatpush1.msra.mxu0 0.0
    %507 = vmatprep.subr.mxu0 0.0
    %508 = vmatpush1.msra.mxu0 0.0
    %509 = vmatprep.subr.mxu0 0.0
    %510 = vmatpush1.msra.mxu0 0.0
    %511 = vmatprep.subr.mxu0 0.0
    %512 = vmatpush1.msra.mxu0 0.0
    %513 = vmatprep.subr.mxu0 0.0
    %514 = vmatpush1.msra.mxu0 0.0
    %515 = vmatprep.subr.mxu0 0.0
    %516 = vmatpush1.msra.mxu0 0.0
    %517 = vmatprep.subr.mxu0 0.0
    %518 = vmatpush1.msra.mxu0 0.0
    %519 = vmatprep.subr.mxu0 0.0
    %520 = vmatpush1.msra.mxu0 0.0
    %521 = vmatprep.subr.mxu0 0.0
    %522 = vmatpush1.msra.mxu0 0.0
    %523 = vmatprep.subr.mxu0 0.0
    %524 = vmatpush1.msra.mxu0 0.0
    %525 = vmatprep.subr.mxu0 0.0
    %526 = vmatpush1.msra.mxu0 0.0
    %527 = vmatprep.subr.mxu0 0.0
    %528 = vmatpush1.msra.mxu0 0.0
    %529 = vmatprep.subr.mxu0 0.0
    %530 = vmatpush1.msra.mxu0 0.0
    %531 = vmatprep.subr.mxu0 0.0
    %532 = vmatpush1.msra.mxu0 0.0
    %533 = vmatprep.subr.mxu0 0.0
    %534 = vmatpush1.msra.mxu0 0.0
    %535 = vmatprep.subr.mxu0 0.0
    %536 = vmatpush1.msra.mxu0 0.0
    %537 = vmatprep.mubr.f32.mxu0 0.0
    %538 = vmatmul.mubr.f32.gmra.mrb[0].mxu0 %v471
    %v539 = vpop.f32.mrb[0].mxu0
    %v540 = vadd.f32 0.0, %v539
    %v541 = vpop.f32.mrb[0].mxu0
    %542 = vdwg.mxu0
    %v544 = vrot.slane %v540, 5
    %v546 = vadd.f32 %v135, %v544
    %v547 = vxor.u32 %v546, 2147483648
    %v548 = vmul.f32 %v547, 1.442695
    %v549 = vpow.pop %v548
    %v550 = vadd.f32 %v549, 1.0
    %v551 = vrcp.pop %v550
    %v552 = vmul.f32 1.0, %v551
    %v553 = vtanh.pop %v546
    %v555 = vrot.slane %v455, 7
    %v557 = vmul.f32 %v552, %v555
    %559 = vrot.lane.b32.xlu0 %v553, 64
    %v560 = vpop.permute.xlu0 %559
    %v562 = vmul.f32 %v552, %v560
    %564 = vrot.lane.b32.xlu0 %v562, 32
    %v565 = vpop.permute.xlu0 %564
    %v567 = vadd.f32 %v557, %v565
    %v568 = vtanh.pop %v567
    %570 = vrot.lane.b32.xlu0 %v568, 64
    %v571 = vpop.permute.xlu0 %570
    %v573 = vmul.f32 %v552, %v571
    %575 = vrot.lane.b32.xlu0 %v573, 32
    %v576 = vpop.permute.xlu0 %575
    %vm578 = vcmask 257027
    %579 = vst.msk [vmem:[#allocation2] sm:$0x8] %vm578, %v576
    %v580 = vrot.slane %v573, 3
    %581 = vrot.lane.b32.xlu0 %v580, 32
    %v582 = vpop.permute.xlu0 %581
    %v583 = vsel %vm142, %v582, 0
    %585 = vmatprep.subr.mxu0 0.0
    %586 = vmatpush1.msra.mxu0 %v138
    %587 = vmatprep.subr.mxu0 0.0
    %588 = vmatpush1.msra.mxu0 %v139
    %589 = vmatprep.subr.mxu0 0.0
    %590 = vmatpush1.msra.mxu0 %v140
    %591 = vmatprep.subr.mxu0 0.0
    %592 = vmatpush1.msra.mxu0 %v141
    %593 = vmatprep.subr.mxu0 0.0
    %594 = vmatpush1.msra.mxu0 0.0
    %595 = vmatprep.subr.mxu0 0.0
    %596 = vmatpush1.msra.mxu0 0.0
    %597 = vmatprep.subr.mxu0 0.0
    %598 = vmatpush1.msra.mxu0 0.0
    %599 = vmatprep.subr.mxu0 0.0
    %600 = vmatpush1.msra.mxu0 0.0
    %601 = vmatprep.subr.mxu0 0.0
    %602 = vmatpush1.msra.mxu0 0.0
    %603 = vmatprep.subr.mxu0 0.0
    %604 = vmatpush1.msra.mxu0 0.0
    %605 = vmatprep.subr.mxu0 0.0
    %606 = vmatpush1.msra.mxu0 0.0
    %607 = vmatprep.subr.mxu0 0.0
    %608 = vmatpush1.msra.mxu0 0.0
    %609 = vmatprep.subr.mxu0 0.0
    %610 = vmatpush1.msra.mxu0 0.0
    %611 = vmatprep.subr.mxu0 0.0
    %612 = vmatpush1.msra.mxu0 0.0
    %613 = vmatprep.subr.mxu0 0.0
    %614 = vmatpush1.msra.mxu0 0.0
    %615 = vmatprep.subr.mxu0 0.0
    %616 = vmatpush1.msra.mxu0 0.0
    %617 = vmatprep.subr.mxu0 0.0
    %618 = vmatpush1.msra.mxu0 0.0
    %619 = vmatprep.subr.mxu0 0.0
    %620 = vmatpush1.msra.mxu0 0.0
    %621 = vmatprep.subr.mxu0 0.0
    %622 = vmatpush1.msra.mxu0 0.0
    %623 = vmatprep.subr.mxu0 0.0
    %624 = vmatpush1.msra.mxu0 0.0
    %625 = vmatprep.subr.mxu0 0.0
    %626 = vmatpush1.msra.mxu0 0.0
    %627 = vmatprep.subr.mxu0 0.0
    %628 = vmatpush1.msra.mxu0 0.0
    %629 = vmatprep.subr.mxu0 0.0
    %630 = vmatpush1.msra.mxu0 0.0
    %631 = vmatprep.subr.mxu0 0.0
    %632 = vmatpush1.msra.mxu0 0.0
    %633 = vmatprep.subr.mxu0 0.0
    %634 = vmatpush1.msra.mxu0 0.0
    %635 = vmatprep.subr.mxu0 0.0
    %636 = vmatpush1.msra.mxu0 0.0
    %637 = vmatprep.subr.mxu0 0.0
    %638 = vmatpush1.msra.mxu0 0.0
    %639 = vmatprep.subr.mxu0 0.0
    %640 = vmatpush1.msra.mxu0 0.0
    %641 = vmatprep.subr.mxu0 0.0
    %642 = vmatpush1.msra.mxu0 0.0
    %643 = vmatprep.subr.mxu0 0.0
    %644 = vmatpush1.msra.mxu0 0.0
    %645 = vmatprep.subr.mxu0 0.0
    %646 = vmatpush1.msra.mxu0 0.0
    %647 = vmatprep.subr.mxu0 0.0
    %648 = vmatpush1.msra.mxu0 0.0
    %649 = vmatprep.mubr.f32.mxu0 0.0
    %650 = vmatmul.mubr.f32.gmra.mrb[0].mxu0 %v583
    %v651 = vpop.f32.mrb[0].mxu0
    %v652 = vadd.f32 0.0, %v651
    %v653 = vpop.f32.mrb[0].mxu0
    %654 = vdwg.mxu0
    %v656 = vrot.slane %v652, 4
    %v658 = vadd.f32 %v135, %v656
    %v659 = vxor.u32 %v658, 2147483648
    %v660 = vmul.f32 %v659, 1.442695
    %v661 = vpow.pop %v660
    %v662 = vadd.f32 %v661, 1.0
    %v663 = vrcp.pop %v662
    %v664 = vmul.f32 1.0, %v663
    %v665 = vtanh.pop %v658
    %v667 = vrot.slane %v567, 7
    %v669 = vmul.f32 %v664, %v667
    %671 = vrot.lane.b32.xlu0 %v665, 64
    %v672 = vpop.permute.xlu0 %671
    %v674 = vmul.f32 %v664, %v672
    %676 = vrot.lane.b32.xlu0 %v674, 32
    %v677 = vpop.permute.xlu0 %676
    %v679 = vadd.f32 %v669, %v677
    %v680 = vtanh.pop %v679
    %682 = vrot.lane.b32.xlu0 %v680, 64
    %v683 = vpop.permute.xlu0 %682
    %v685 = vmul.f32 %v664, %v683
    %687 = vrot.lane.b32.xlu0 %v685, 32
    %v688 = vpop.permute.xlu0 %687
    %vm690 = vcmask 258052
    %691 = vst.msk [vmem:[#allocation2] sm:$0x10] %vm690, %v688
    %v692 = vrot.slane %v685, 4
    %693 = vrot.lane.b32.xlu0 %v692, 32
    %v694 = vpop.permute.xlu0 %693
    %v695 = vsel %vm142, %v694, 0
    %697 = vmatprep.subr.mxu0 0.0
    %698 = vmatpush1.msra.mxu0 %v138
    %699 = vmatprep.subr.mxu0 0.0
    %700 = vmatpush1.msra.mxu0 %v139
    %701 = vmatprep.subr.mxu0 0.0
    %702 = vmatpush1.msra.mxu0 %v140
    %703 = vmatprep.subr.mxu0 0.0
    %704 = vmatpush1.msra.mxu0 %v141
    %705 = vmatprep.subr.mxu0 0.0
    %706 = vmatpush1.msra.mxu0 0.0
    %707 = vmatprep.subr.mxu0 0.0
    %708 = vmatpush1.msra.mxu0 0.0
    %709 = vmatprep.subr.mxu0 0.0
    %710 = vmatpush1.msra.mxu0 0.0
    %711 = vmatprep.subr.mxu0 0.0
    %712 = vmatpush1.msra.mxu0 0.0
    %713 = vmatprep.subr.mxu0 0.0
    %714 = vmatpush1.msra.mxu0 0.0
    %715 = vmatprep.subr.mxu0 0.0
    %716 = vmatpush1.msra.mxu0 0.0
    %717 = vmatprep.subr.mxu0 0.0
    %718 = vmatpush1.msra.mxu0 0.0
    %719 = vmatprep.subr.mxu0 0.0
    %720 = vmatpush1.msra.mxu0 0.0
    %721 = vmatprep.subr.mxu0 0.0
    %722 = vmatpush1.msra.mxu0 0.0
    %723 = vmatprep.subr.mxu0 0.0
    %724 = vmatpush1.msra.mxu0 0.0
    %725 = vmatprep.subr.mxu0 0.0
    %726 = vmatpush1.msra.mxu0 0.0
    %727 = vmatprep.subr.mxu0 0.0
    %728 = vmatpush1.msra.mxu0 0.0
    %729 = vmatprep.subr.mxu0 0.0
    %730 = vmatpush1.msra.mxu0 0.0
    %731 = vmatprep.subr.mxu0 0.0
    %732 = vmatpush1.msra.mxu0 0.0
    %733 = vmatprep.subr.mxu0 0.0
    %734 = vmatpush1.msra.mxu0 0.0
    %735 = vmatprep.subr.mxu0 0.0
    %736 = vmatpush1.msra.mxu0 0.0
    %737 = vmatprep.subr.mxu0 0.0
    %738 = vmatpush1.msra.mxu0 0.0
    %739 = vmatprep.subr.mxu0 0.0
    %740 = vmatpush1.msra.mxu0 0.0
    %741 = vmatprep.subr.mxu0 0.0
    %742 = vmatpush1.msra.mxu0 0.0
    %743 = vmatprep.subr.mxu0 0.0
    %744 = vmatpush1.msra.mxu0 0.0
    %745 = vmatprep.subr.mxu0 0.0
    %746 = vmatpush1.msra.mxu0 0.0
    %747 = vmatprep.subr.mxu0 0.0
    %748 = vmatpush1.msra.mxu0 0.0
    %749 = vmatprep.subr.mxu0 0.0
    %750 = vmatpush1.msra.mxu0 0.0
    %751 = vmatprep.subr.mxu0 0.0
    %752 = vmatpush1.msra.mxu0 0.0
    %753 = vmatprep.subr.mxu0 0.0
    %754 = vmatpush1.msra.mxu0 0.0
    %755 = vmatprep.subr.mxu0 0.0
    %756 = vmatpush1.msra.mxu0 0.0
    %757 = vmatprep.subr.mxu0 0.0
    %758 = vmatpush1.msra.mxu0 0.0
    %759 = vmatprep.subr.mxu0 0.0
    %760 = vmatpush1.msra.mxu0 0.0
    %761 = vmatprep.mubr.f32.mxu0 0.0
    %762 = vmatmul.mubr.f32.gmra.mrb[0].mxu0 %v695
    %v763 = vpop.f32.mrb[0].mxu0
    %v764 = vadd.f32 0.0, %v763
    %v765 = vpop.f32.mrb[0].mxu0
    %766 = vdwg.mxu0
    %v768 = vrot.slane %v764, 3
    %v770 = vadd.f32 %v135, %v768
    %v771 = vxor.u32 %v770, 2147483648
    %v772 = vmul.f32 %v771, 1.442695
    %v773 = vpow.pop %v772
    %v774 = vadd.f32 %v773, 1.0
    %v775 = vrcp.pop %v774
    %v776 = vmul.f32 1.0, %v775
    %v777 = vtanh.pop %v770
    %v779 = vrot.slane %v679, 7
    %v781 = vmul.f32 %v776, %v779
    %783 = vrot.lane.b32.xlu0 %v777, 64
    %v784 = vpop.permute.xlu0 %783
    %v786 = vmul.f32 %v776, %v784
    %788 = vrot.lane.b32.xlu0 %v786, 32
    %v789 = vpop.permute.xlu0 %788
    %v791 = vadd.f32 %v781, %v789
    %v792 = vtanh.pop %v791
    %794 = vrot.lane.b32.xlu0 %v792, 64
    %v795 = vpop.permute.xlu0 %794
    %v797 = vmul.f32 %v776, %v795
    %799 = vrot.lane.b32.xlu0 %v797, 32
    %v800 = vpop.permute.xlu0 %799
    %vm802 = vcmask 259077
    %803 = vst.msk [vmem:[#allocation2] sm:$0x20] %vm802, %v800
    %v804 = vrot.slane %v797, 5
    %805 = vrot.lane.b32.xlu0 %v804, 32
    %v806 = vpop.permute.xlu0 %805
    %v807 = vsel %vm142, %v806, 0
    %809 = vmatprep.subr.mxu0 0.0
    %810 = vmatpush1.msra.mxu0 %v138
    %811 = vmatprep.subr.mxu0 0.0
    %812 = vmatpush1.msra.mxu0 %v139
    %813 = vmatprep.subr.mxu0 0.0
    %814 = vmatpush1.msra.mxu0 %v140
    %815 = vmatprep.subr.mxu0 0.0
    %816 = vmatpush1.msra.mxu0 %v141
    %817 = vmatprep.subr.mxu0 0.0
    %818 = vmatpush1.msra.mxu0 0.0
    %819 = vmatprep.subr.mxu0 0.0
    %820 = vmatpush1.msra.mxu0 0.0
    %821 = vmatprep.subr.mxu0 0.0
    %822 = vmatpush1.msra.mxu0 0.0
    %823 = vmatprep.subr.mxu0 0.0
    %824 = vmatpush1.msra.mxu0 0.0
    %825 = vmatprep.subr.mxu0 0.0
    %826 = vmatpush1.msra.mxu0 0.0
    %827 = vmatprep.subr.mxu0 0.0
    %828 = vmatpush1.msra.mxu0 0.0
    %829 = vmatprep.subr.mxu0 0.0
    %830 = vmatpush1.msra.mxu0 0.0
    %831 = vmatprep.subr.mxu0 0.0
    %832 = vmatpush1.msra.mxu0 0.0
    %833 = vmatprep.subr.mxu0 0.0
    %834 = vmatpush1.msra.mxu0 0.0
    %835 = vmatprep.subr.mxu0 0.0
    %836 = vmatpush1.msra.mxu0 0.0
    %837 = vmatprep.subr.mxu0 0.0
    %838 = vmatpush1.msra.mxu0 0.0
    %839 = vmatprep.subr.mxu0 0.0
    %840 = vmatpush1.msra.mxu0 0.0
    %841 = vmatprep.subr.mxu0 0.0
    %842 = vmatpush1.msra.mxu0 0.0
    %843 = vmatprep.subr.mxu0 0.0
    %844 = vmatpush1.msra.mxu0 0.0
    %845 = vmatprep.subr.mxu0 0.0
    %846 = vmatpush1.msra.mxu0 0.0
    %847 = vmatprep.subr.mxu0 0.0
    %848 = vmatpush1.msra.mxu0 0.0
    %849 = vmatprep.subr.mxu0 0.0
    %850 = vmatpush1.msra.mxu0 0.0
    %851 = vmatprep.subr.mxu0 0.0
    %852 = vmatpush1.msra.mxu0 0.0
    %853 = vmatprep.subr.mxu0 0.0
    %854 = vmatpush1.msra.mxu0 0.0
    %855 = vmatprep.subr.mxu0 0.0
    %856 = vmatpush1.msra.mxu0 0.0
    %857 = vmatprep.subr.mxu0 0.0
    %858 = vmatpush1.msra.mxu0 0.0
    %859 = vmatprep.subr.mxu0 0.0
    %860 = vmatpush1.msra.mxu0 0.0
    %861 = vmatprep.subr.mxu0 0.0
    %862 = vmatpush1.msra.mxu0 0.0
    %863 = vmatprep.subr.mxu0 0.0
    %864 = vmatpush1.msra.mxu0 0.0
    %865 = vmatprep.subr.mxu0 0.0
    %866 = vmatpush1.msra.mxu0 0.0
    %867 = vmatprep.subr.mxu0 0.0
    %868 = vmatpush1.msra.mxu0 0.0
    %869 = vmatprep.subr.mxu0 0.0
    %870 = vmatpush1.msra.mxu0 0.0
    %871 = vmatprep.subr.mxu0 0.0
    %872 = vmatpush1.msra.mxu0 0.0
    %873 = vmatprep.mubr.f32.mxu0 0.0
    %874 = vmatmul.mubr.f32.gmra.mrb[0].mxu0 %v807
    %v875 = vpop.f32.mrb[0].mxu0
    %v876 = vadd.f32 0.0, %v875
    %v877 = vpop.f32.mrb[0].mxu0
    %878 = vdwg.mxu0
    %v880 = vrot.slane %v876, 2
    %v882 = vadd.f32 %v135, %v880
    %v883 = vxor.u32 %v882, 2147483648
    %v884 = vmul.f32 %v883, 1.442695
    %v885 = vpow.pop %v884
    %v886 = vadd.f32 %v885, 1.0
    %v887 = vrcp.pop %v886
    %v888 = vmul.f32 1.0, %v887
    %v889 = vtanh.pop %v882
    %v891 = vrot.slane %v791, 7
    %v893 = vmul.f32 %v888, %v891
    %895 = vrot.lane.b32.xlu0 %v889, 64
    %v896 = vpop.permute.xlu0 %895
    %v898 = vmul.f32 %v888, %v896
    %900 = vrot.lane.b32.xlu0 %v898, 32
    %v901 = vpop.permute.xlu0 %900
    %v903 = vadd.f32 %v893, %v901
    %v904 = vtanh.pop %v903
    %906 = vrot.lane.b32.xlu0 %v904, 64
    %v907 = vpop.permute.xlu0 %906
    %v909 = vmul.f32 %v888, %v907
    %911 = vrot.lane.b32.xlu0 %v909, 32
    %v912 = vpop.permute.xlu0 %911
    %vm914 = vcmask 260102
    %915 = vst.msk [vmem:[#allocation2] sm:$0x40] %vm914, %v912
    %v916 = vrot.slane %v909, 6
    %917 = vrot.lane.b32.xlu0 %v916, 32
    %v918 = vpop.permute.xlu0 %917
    %v919 = vsel %vm142, %v918, 0
    %921 = vmatprep.subr.mxu0 0.0
    %922 = vmatpush1.msra.mxu0 %v138
    %923 = vmatprep.subr.mxu0 0.0
    %924 = vmatpush1.msra.mxu0 %v139
    %925 = vmatprep.subr.mxu0 0.0
    %926 = vmatpush1.msra.mxu0 %v140
    %927 = vmatprep.subr.mxu0 0.0
    %928 = vmatpush1.msra.mxu0 %v141
    %929 = vmatprep.subr.mxu0 0.0
    %930 = vmatpush1.msra.mxu0 0.0
    %931 = vmatprep.subr.mxu0 0.0
    %932 = vmatpush1.msra.mxu0 0.0
    %933 = vmatprep.subr.mxu0 0.0
    %934 = vmatpush1.msra.mxu0 0.0
    %935 = vmatprep.subr.mxu0 0.0
    %936 = vmatpush1.msra.mxu0 0.0
    %937 = vmatprep.subr.mxu0 0.0
    %938 = vmatpush1.msra.mxu0 0.0
    %939 = vmatprep.subr.mxu0 0.0
    %940 = vmatpush1.msra.mxu0 0.0
    %941 = vmatprep.subr.mxu0 0.0
    %942 = vmatpush1.msra.mxu0 0.0
    %943 = vmatprep.subr.mxu0 0.0
    %944 = vmatpush1.msra.mxu0 0.0
    %945 = vmatprep.subr.mxu0 0.0
    %946 = vmatpush1.msra.mxu0 0.0
    %947 = vmatprep.subr.mxu0 0.0
    %948 = vmatpush1.msra.mxu0 0.0
    %949 = vmatprep.subr.mxu0 0.0
    %950 = vmatpush1.msra.mxu0 0.0
    %951 = vmatprep.subr.mxu0 0.0
    %952 = vmatpush1.msra.mxu0 0.0
    %953 = vmatprep.subr.mxu0 0.0
    %954 = vmatpush1.msra.mxu0 0.0
    %955 = vmatprep.subr.mxu0 0.0
    %956 = vmatpush1.msra.mxu0 0.0
    %957 = vmatprep.subr.mxu0 0.0
    %958 = vmatpush1.msra.mxu0 0.0
    %959 = vmatprep.subr.mxu0 0.0
    %960 = vmatpush1.msra.mxu0 0.0
    %961 = vmatprep.subr.mxu0 0.0
    %962 = vmatpush1.msra.mxu0 0.0
    %963 = vmatprep.subr.mxu0 0.0
    %964 = vmatpush1.msra.mxu0 0.0
    %965 = vmatprep.subr.mxu0 0.0
    %966 = vmatpush1.msra.mxu0 0.0
    %967 = vmatprep.subr.mxu0 0.0
    %968 = vmatpush1.msra.mxu0 0.0
    %969 = vmatprep.subr.mxu0 0.0
    %970 = vmatpush1.msra.mxu0 0.0
    %971 = vmatprep.subr.mxu0 0.0
    %972 = vmatpush1.msra.mxu0 0.0
    %973 = vmatprep.subr.mxu0 0.0
    %974 = vmatpush1.msra.mxu0 0.0
    %975 = vmatprep.subr.mxu0 0.0
    %976 = vmatpush1.msra.mxu0 0.0
    %977 = vmatprep.subr.mxu0 0.0
    %978 = vmatpush1.msra.mxu0 0.0
    %979 = vmatprep.subr.mxu0 0.0
    %980 = vmatpush1.msra.mxu0 0.0
    %981 = vmatprep.subr.mxu0 0.0
    %982 = vmatpush1.msra.mxu0 0.0
    %983 = vmatprep.subr.mxu0 0.0
    %984 = vmatpush1.msra.mxu0 0.0
    %985 = vmatprep.mubr.f32.mxu0 0.0
    %986 = vmatmul.mubr.f32.gmra.mrb[0].mxu0 %v919
    %v987 = vpop.f32.mrb[0].mxu0
    %v988 = vadd.f32 0.0, %v987
    %v989 = vpop.f32.mrb[0].mxu0
    %990 = vdwg.mxu0
    %v992 = vrot.slane %v988, 1
    %v994 = vadd.f32 %v135, %v992
    %v995 = vxor.u32 %v994, 2147483648
    %v996 = vmul.f32 %v995, 1.442695
    %v997 = vpow.pop %v996
    %v998 = vadd.f32 %v997, 1.0
    %v999 = vrcp.pop %v998
    %v1000 = vmul.f32 1.0, %v999
    %v1001 = vtanh.pop %v994
    %v1003 = vrot.slane %v903, 7
    %v1005 = vmul.f32 %v1000, %v1003
    %1007 = vrot.lane.b32.xlu0 %v1001, 64
    %v1008 = vpop.permute.xlu0 %1007
    %v1010 = vmul.f32 %v1000, %v1008
    %1012 = vrot.lane.b32.xlu0 %v1010, 32
    %v1013 = vpop.permute.xlu0 %1012
    %v1015 = vadd.f32 %v1005, %v1013
    %v1016 = vtanh.pop %v1015
    %1018 = vrot.lane.b32.xlu0 %v1016, 64
    %v1019 = vpop.permute.xlu0 %1018
    %v1021 = vmul.f32 %v1000, %v1019
    %1023 = vrot.lane.b32.xlu0 %v1021, 32
    %v1024 = vpop.permute.xlu0 %1023
    %vm1026 = vcmask 261127
    %1027 = vst.msk [vmem:[#allocation2] sm:$0x80] %vm1026, %v1024
    %v1028 = vld [vmem:[#allocation2] sm:$0xff]
    %v1029 = vld [vmem:[%s6] sm:$0xff]
    %v1030 = vld [vmem:[%s6 + $0x8] sm:$0xff]
    %v1031 = vld [vmem:[%s6 + $0x10] sm:$0xff]
    %v1032 = vld [vmem:[%s6 + $0x18] sm:$0xff]
    %v1033 = vld [vmem:[%s7] sm:$0x1]
    %v1035 = vlaneseq
    %v1036 = vshrl.u32 %v1035, 7
    %v1037 = vsub.s32 0, %v1036
    %v1038 = vrot.slane %v1033, %v1037
    %v1041 = vsel %vm142, %v1028, 0
    %1043 = vmatprep.subr.mxu0 0.0
    %1044 = vmatpush1.msra.mxu0 %v1029
    %1045 = vmatprep.subr.mxu0 0.0
    %1046 = vmatpush1.msra.mxu0 %v1030
    %1047 = vmatprep.subr.mxu0 0.0
    %1048 = vmatpush1.msra.mxu0 %v1031
    %1049 = vmatprep.subr.mxu0 0.0
    %1050 = vmatpush1.msra.mxu0 %v1032
    %1051 = vmatprep.subr.mxu0 0.0
    %1052 = vmatpush1.msra.mxu0 0.0
    %1053 = vmatprep.subr.mxu0 0.0
    %1054 = vmatpush1.msra.mxu0 0.0
    %1055 = vmatprep.subr.mxu0 0.0
    %1056 = vmatpush1.msra.mxu0 0.0
    %1057 = vmatprep.subr.mxu0 0.0
    %1058 = vmatpush1.msra.mxu0 0.0
    %1059 = vmatprep.subr.mxu0 0.0
    %1060 = vmatpush1.msra.mxu0 0.0
    %1061 = vmatprep.subr.mxu0 0.0
    %1062 = vmatpush1.msra.mxu0 0.0
    %1063 = vmatprep.subr.mxu0 0.0
    %1064 = vmatpush1.msra.mxu0 0.0
    %1065 = vmatprep.subr.mxu0 0.0
    %1066 = vmatpush1.msra.mxu0 0.0
    %1067 = vmatprep.subr.mxu0 0.0
    %1068 = vmatpush1.msra.mxu0 0.0
    %1069 = vmatprep.subr.mxu0 0.0
    %1070 = vmatpush1.msra.mxu0 0.0
    %1071 = vmatprep.subr.mxu0 0.0
    %1072 = vmatpush1.msra.mxu0 0.0
    %1073 = vmatprep.subr.mxu0 0.0
    %1074 = vmatpush1.msra.mxu0 0.0
    %1075 = vmatprep.subr.mxu0 0.0
    %1076 = vmatpush1.msra.mxu0 0.0
    %1077 = vmatprep.subr.mxu0 0.0
    %1078 = vmatpush1.msra.mxu0 0.0
    %1079 = vmatprep.subr.mxu0 0.0
    %1080 = vmatpush1.msra.mxu0 0.0
    %1081 = vmatprep.subr.mxu0 0.0
    %1082 = vmatpush1.msra.mxu0 0.0
    %1083 = vmatprep.subr.mxu0 0.0
    %1084 = vmatpush1.msra.mxu0 0.0
    %1085 = vmatprep.subr.mxu0 0.0
    %1086 = vmatpush1.msra.mxu0 0.0
    %1087 = vmatprep.subr.mxu0 0.0
    %1088 = vmatpush1.msra.mxu0 0.0
    %1089 = vmatprep.subr.mxu0 0.0
    %1090 = vmatpush1.msra.mxu0 0.0
    %1091 = vmatprep.subr.mxu0 0.0
    %1092 = vmatpush1.msra.mxu0 0.0
    %1093 = vmatprep.subr.mxu0 0.0
    %1094 = vmatpush1.msra.mxu0 0.0
    %1095 = vmatprep.subr.mxu0 0.0
    %1096 = vmatpush1.msra.mxu0 0.0
    %1097 = vmatprep.subr.mxu0 0.0
    %1098 = vmatpush1.msra.mxu0 0.0
    %1099 = vmatprep.subr.mxu0 0.0
    %1100 = vmatpush1.msra.mxu0 0.0
    %1101 = vmatprep.subr.mxu0 0.0
    %1102 = vmatpush1.msra.mxu0 0.0
    %1103 = vmatprep.subr.mxu0 0.0
    %1104 = vmatpush1.msra.mxu0 0.0
    %1105 = vmatprep.subr.mxu0 0.0
    %1106 = vmatpush1.msra.mxu0 0.0
    %1107 = vmatprep.mubr.f32.mxu0 0.0
    %1108 = vmatmul.mubr.f32.gmra.mrb[0].mxu0 %v1041
    %v1109 = vpop.f32.mrb[0].mxu0
    %v1110 = vadd.f32 %v1038, %v1109
    %v1111 = vpop.f32.mrb[0].mxu0
    %1112 = vdwg.mxu0
    %s1113 = sld [smem:[#allocation3]]
    %v1114 = vstv %s1113
    %v1115 = vmul.f32 %v1110, %v1114
    %vm1116 = vcmask 31744
    %v1117 = vsel %vm1116, %v1115, -inf
    %v1118 = vrot.slane %v1117, 4
    %v1119 = vmax.f32 %v1117, %v1118
    %v1120 = vrot.slane %v1119, 2
    %v1121 = vmax.f32 %v1119, %v1120
    %v1122 = vrot.slane %v1121, 1
    %v1123 = vmax.f32 %v1121, %v1122
    %v1124 = vsub.f32 %v1115, %v1123
    %v1125 = vmul.f32 %v1124, 1.442695
    %v1126 = vpow.pop %v1125
    %v1127 = vsel %vm1116, %v1126, 0.0
    %v1128 = vrot.slane %v1127, 4
    %v1129 = vadd.f32 %v1127, %v1128
    %v1130 = vrot.slane %v1129, 2
    %v1131 = vadd.f32 %v1129, %v1130
    %v1132 = vrot.slane %v1131, 1
    %v1133 = vadd.f32 %v1131, %v1132
    %v1134 = vrcp.pop %v1133
    %v1135 = vmul.f32 %v1126, %v1134
    %1136 = vst.msk [vmem:[%s10] sm:$0xff] %vm1116, %v1135
    %v1137 = vld [vmem:[#allocation5] sm:$0xff]
    %v1138 = vld [vmem:[%s8] sm:$0x1]
    %v1140 = vlaneseq
    %v1141 = vshrl.u32 %v1140, 7
    %v1142 = vsub.s32 0, %v1141
    %v1143 = vrot.slane %v1138, %v1142
    %v1145 = vmul.f32 %v1137, %v1143
    %v1146 = vsel %vm64, %v1145, 0.0
    %1147 = vadd.xlane.f32.xlu0 %v1146
    %v1148 = vpop.xlane.xlu0 %1147
    %v1149 = vld [vmem:[#allocation4] sm:$0x1]
    %v1151 = vlaneseq
    %v1152 = vshrl.u32 %v1151, 7
    %v1153 = vsub.s32 0, %v1152
    %v1154 = vrot.slane %v1149, %v1153
    %v1156 = vadd.f32 %v1148, %v1154
    %vm1157 = vcmask 7168
    %1158 = vst.msk [vmem:[%s11] sm:$0xff] %vm1157, %v1156
    // Predicated region
    $region46: #{tpu_custom_call.1} parent=1 // pred_check
      _
    $region47: #{tpu_custom_call.1} parent=1 // pred_check_branch
      %1160 = sbr.rel (0) target = $region49
    $region48: #{tpu_custom_call.1} parent=1 // pred_region
      _
    $region49: #{tpu_custom_call.1} parent=1 // pred_fallthru
      _
    // Predicated region
    $region50: #{tpu_custom_call.1} parent=1 // pred_check
      _
    $region51: #{tpu_custom_call.1} parent=1 // pred_check_branch
      %1162 = sbr.rel (0) target = $region53
    $region52: #{tpu_custom_call.1} parent=1 // pred_region
      _
    $region53: #{tpu_custom_call.1} parent=1 // pred_fallthru
      _
    // Predicated region
    $region54: #{tpu_custom_call.1} parent=1 // pred_check
      _
    $region55: #{tpu_custom_call.1} parent=1 // pred_check_branch
      %1164 = sbr.rel (0) target = $region57
    $region56: #{tpu_custom_call.1} parent=1 // pred_region
      _
    $region57: #{tpu_custom_call.1} parent=1 // pred_fallthru
      _
    // Predicated region
    $region58: #{tpu_custom_call.1} parent=1 // pred_check
      _
    $region59: #{tpu_custom_call.1} parent=1 // pred_check_branch
      %1166 = sbr.rel (0) target = $region61
    $region60: #{tpu_custom_call.1} parent=1 // pred_region
      _
    $region61: #{tpu_custom_call.1} parent=1 // pred_fallthru
      _
    %1167 = vsyncpa [#allocation6], 1

</llo_original>
